<compile_context>
chip_gen: v7x
topology: tpu7x:2x2x1
jax: 0.10.0
libtpu: 0.0.40
codegen_flags: <defaults>
</compile_context>

<pallas_src>
import jax
import jax.numpy as jnp
from jax.experimental import pallas as pl
from jax.experimental.pallas import tpu as pltpu

# ~2 MiB per x/out block: 1 MiB tiles already reach ~85% of HBM roofline for a
# streaming f32 add; with 2-deep buffering on x/pe/out total live VMEM stays
# well under 16 MiB, safe on v5e/v6e/v7x alike.
_BLOCK_BUDGET_BYTES = 2 * 1024 * 1024
# Explicit scoped-VMEM limit: >= every generation's default, < v7x physical.
_VMEM_LIMIT_BYTES = 48 * 1024 * 1024


def _add_pe_kernel(x_ref, pe_ref, o_ref):
    # Single VPU add; the pe block broadcasts over the leading batch block dim.
    o_ref[...] = (x_ref[...] + pe_ref[...]).astype(o_ref.dtype)


def learnable_positional_encoding(x, position_embeddings):
    """x: (B, S, D); position_embeddings: (max_len, D). Returns x + pe[:S]."""
    B, S, D = x.shape
    max_len, Dp = position_embeddings.shape
    assert Dp == D and max_len >= S

    # Match PyTorch type promotion (e.g. bf16 x + f32 table -> f32 out).
    out_dtype = jnp.result_type(x.dtype, position_embeddings.dtype)
    itemsize = jnp.dtype(out_dtype).itemsize
    budget_elems = max(128, _BLOCK_BUDGET_BYTES // itemsize)

    compiler_params = pltpu.CompilerParams(
        dimension_semantics=("parallel", "parallel"),
        vmem_limit_bytes=_VMEM_LIMIT_BYTES,
    )

    F = S * D  # flattened per-batch-row length

    if F % 128 == 0:
        # ---------------- Lane-dense flattened path -------------------------
        x_flat = x.reshape(B, F)
        pe_flat = position_embeddings.reshape(1, max_len * D)

        # Batch rows per block: full B when it fits (or B <= 8, where the
        # sublane rule forces the full dim anyway), else a multiple of 8.
        rows_fit = max(1, budget_elems // F)
        if rows_fit >= B or B <= 8:
            Bt = B
        else:
            Bt = max(8, (rows_fit // 8) * 8)

        # Lane-axis block: multiple of 128, sized so Bt * L ~ budget.
        L = max(128, ((budget_elems // Bt) // 128) * 128)
        L = min(L, F)

        grid = (pl.cdiv(F, L), pl.cdiv(B, Bt))  # flat-tile OUTER, batch INNER
        out = pl.pallas_call(
            _add_pe_kernel,
            out_shape=jax.ShapeDtypeStruct((B, F), out_dtype),
            grid_spec=pltpu.PrefetchScalarGridSpec(
                num_scalar_prefetch=0,
                grid=grid,
                in_specs=[
                    pl.BlockSpec((Bt, L), lambda f, b: (b, f)),
                    # pe block depends only on the outer axis -> VMEM-resident
                    # across the entire batch sweep.
                    pl.BlockSpec((1, L), lambda f, b: (0, f)),
                ],
                out_specs=pl.BlockSpec((Bt, L), lambda f, b: (b, f)),
            ),
            compiler_params=compiler_params,
        )(x_flat, pe_flat)
        return out.reshape(B, S, D)

    # ---------------- Fallback 3-D path (S*D not a multiple of 128) ---------
    # Keep D as the (full) last block dim; byte-budget the seq tile and widen
    # the batch block when whole sequences are tiny.
    TS = budget_elems // max(D, 1)
    if TS >= S:
        TS = S
        Bt = max(1, min(B, budget_elems // max(S * D, 1)))
        while B % Bt != 0:  # keep the leading block dim an exact divisor of B
            Bt -= 1
    else:
        TS = max(8, (TS // 8) * 8)
        Bt = 1

    grid = (pl.cdiv(S, TS), pl.cdiv(B, Bt))  # seq OUTER, batch INNER
    return pl.pallas_call(
        _add_pe_kernel,
        out_shape=jax.ShapeDtypeStruct((B, S, D), out_dtype),
        grid_spec=pltpu.PrefetchScalarGridSpec(
            num_scalar_prefetch=0,
            grid=grid,
            in_specs=[
                pl.BlockSpec((Bt, TS, D), lambda s, b: (b, s, 0)),
                pl.BlockSpec((TS, D), lambda s, b: (s, 0)),
            ],
            out_specs=pl.BlockSpec((Bt, TS, D), lambda s, b: (b, s, 0)),
        ),
        compiler_params=compiler_params,
    )(x, position_embeddings)


if __name__ == "__main__":
    key = jax.random.PRNGKey(0)
    k1, k2, k3, k4, k5, k6 = jax.random.split(key, 6)

    # Case 1: shapes implied by the module (batch=2, seq=8, d_model=32).
    B, S, D, MAX_LEN = 2, 8, 32, 16
    x = jax.random.normal(k1, (B, S, D), dtype=jnp.float32)
    pe = jax.random.normal(k2, (MAX_LEN, D), dtype=jnp.float32)
    out = jax.block_until_ready(learnable_positional_encoding(x, pe))
    ref = x + pe[:S][None, :, :]
    assert out.shape == ref.shape and out.dtype == ref.dtype
    assert jnp.allclose(out, ref, atol=1e-6, rtol=1e-6)

    # Case 2: already lane-dense d_model (D % 128 == 0), seq < max_len.
    B2, S2, D2, MAX_LEN2 = 2, 16, 128, 32
    x2 = jax.random.normal(k3, (B2, S2, D2), dtype=jnp.float32)
    pe2 = jax.random.normal(k4, (MAX_LEN2, D2), dtype=jnp.float32)
    out2 = jax.block_until_ready(learnable_positional_encoding(x2, pe2))
    assert jnp.allclose(out2, x2 + pe2[:S2][None, :, :], atol=1e-6, rtol=1e-6)

    # Case 3: S*D not a multiple of 128 -> exercises the 3-D fallback path.
    B3, S3, D3, MAX_LEN3 = 2, 5, 24, 7
    x3 = jax.random.normal(k5, (B3, S3, D3), dtype=jnp.float32)
    pe3 = jax.random.normal(k6, (MAX_LEN3, D3), dtype=jnp.float32)
    out3 = jax.block_until_ready(learnable_positional_encoding(x3, pe3))
    assert jnp.allclose(out3, x3 + pe3[:S3][None, :, :], atol=1e-6, rtol=1e-6)

    print("KERNEL_OK")
</pallas_src>

<mosaic_0001>
module attributes {stable_mosaic.version = 11 : i64} {
  func.func @_add_pe_kernel(%arg0: i32, %arg1: i32, %arg2: memref<2x256xf32, #tpu.memory_space<vmem>>, %arg3: memref<1x256xf32, #tpu.memory_space<vmem>>, %arg4: memref<2x256xf32, #tpu.memory_space<vmem>>) attributes {dimension_semantics = [#tpu.dimension_semantics<parallel>, #tpu.dimension_semantics<parallel>], iteration_bounds = array<i64: 1, 1>, scalar_prefetch = 0 : i64, scratch_operands = 0 : i64, tpu.core_type = #tpu.core_type<tc>, window_params = [{transform_indices = @transform_0, window_bounds = array<i64: 2, 256>}, {transform_indices = @transform_1, window_bounds = array<i64: 1, 256>}, {transform_indices = @transform_2, window_bounds = array<i64: 2, 256>}]} {
    %c0 = arith.constant 0 : index
    %c0_0 = arith.constant 0 : index
    %0 = vector.load %arg2[%c0, %c0_0] : memref<2x256xf32, #tpu.memory_space<vmem>>, vector<2x256xf32>
    %c0_1 = arith.constant 0 : index
    %c0_2 = arith.constant 0 : index
    %1 = vector.load %arg3[%c0_1, %c0_2] : memref<1x256xf32, #tpu.memory_space<vmem>>, vector<1x256xf32>
    %2 = vector.broadcast %1 : vector<1x256xf32> to vector<2x256xf32>
    %3 = arith.addf %0, %2 : vector<2x256xf32>
    %c0_3 = arith.constant 0 : index
    %c0_4 = arith.constant 0 : index
    %4 = vector.load %arg4[%c0_3, %c0_4] : memref<2x256xf32, #tpu.memory_space<vmem>>, vector<2x256xf32>
    tpu.vector_store %arg4[%c0_3, %c0_4], %3 {strides = array<i32>} : memref<2x256xf32, #tpu.memory_space<vmem>>, vector<2x256xf32>,
    return
  }
  func.func @transform_0(%arg0: i32, %arg1: i32) -> (i32, i32) {
    %c0_i32 = arith.constant 0 : i32
    return %arg1, %arg0 : i32, i32
  }
  func.func @transform_1(%arg0: i32, %arg1: i32) -> (i32, i32) {
    %c0_i32 = arith.constant 0 : i32
    %c0_i32_0 = arith.constant 0 : i32
    return %c0_i32, %arg0 : i32, i32
  }
  func.func @transform_2(%arg0: i32, %arg1: i32) -> (i32, i32) {
    %c0_i32 = arith.constant 0 : i32
    return %arg1, %arg0 : i32, i32
  }
}

</mosaic_0001>

<llo_original>
// kernel: tpu_custom_call.1
$region0: #{tpu_custom_call.1}
  #allocation0 [shape = 'u32[]', space=smem, size = 0x4, offset = 0x4, fixed_abs, tag = 'smem constant byte address 0x4 - core index']
  #allocation1 [shape = 'u32[144,128]{1,0:T(1,128)}', space=vmem, size = 0x12000, scoped, tag = 'internal scratch']
  %s0 = inlined_call_operand.hbm [shape: f32[2,256], index: 0, kind: input, shape index: {}]
  %s1 = inlined_call_operand.hbm [shape: f32[1,512], index: 1, kind: input, shape index: {}]
  %s2 = inlined_call_operand.hbm [shape: f32[2,256], index: 2, kind: output, shape index: {}]
  %s3 = sld [smem:[#allocation0]]
  $region26: #{tpu_custom_call.1} parent=0
    _
  %s5 = ssub.s32 1, %s3
  %s6 = scalar_select 0, %s5, %s3
  $region1: #{tpu_custom_call.1} parent=0
    #allocation2 [shape = 'u8[2048]{0}', space=vmem, size = 0x800, scoped, tag = 'input window, operand 0, single buffered']
    #allocation3 [shape = 's32[1]{0}', space=sflag, size = 0x4, scoped, tag = 'scoped memory for tpu_custom_call.1']
    #allocation4 [shape = 's32[1]{0}', space=sflag, size = 0x4, scoped, tag = 'scoped memory for tpu_custom_call.1']
    #allocation5 [shape = 'u8[1024]{0}', space=vmem, size = 0x400, scoped, tag = 'input window, operand 1, single buffered']
    #allocation6 [shape = 's32[1]{0}', space=sflag, size = 0x4, scoped, tag = 'scoped memory for tpu_custom_call.1']
    #allocation7 [shape = 'u8[2048]{0}', space=vmem, size = 0x800, scoped, tag = 'output window, operand 0, single buffered']
    %7 = vsyncpa [#allocation3], 0
    %8 = vsyncpa [#allocation6], 0
    %9 = vsyncpa [#allocation4], 0
    // Predicated region
    $region2: #{tpu_custom_call.1} parent=1 // pred_check
      _
    $region3: #{tpu_custom_call.1} parent=1 // pred_check_branch
      %11 = sbr.rel (0) target = $region5
    $region4: #{tpu_custom_call.1} parent=1 // pred_region
      %s13 = ssub.s32 64, 64
      %14 = vsyncadd [#allocation3], %s13
      %s16 = sshll.u32 [#allocation2], 4
      %s17 = int_to_ptr.vmem [resolvable:$true] %s16
      %19 = dma.hbm_to_vmem [thread:$0]  %s0, 64, %s17, [#allocation3]
    $region5: #{tpu_custom_call.1} parent=1 // pred_fallthru
      _
    // Predicated region
    $region6: #{tpu_custom_call.1} parent=1 // pred_check
      _
    $region7: #{tpu_custom_call.1} parent=1 // pred_check_branch
      %21 = sbr.rel (0) target = $region9
    $region8: #{tpu_custom_call.1} parent=1 // pred_region
      %s23 = ssub.s32 32, 32
      %24 = vsyncadd [#allocation6], %s23
      %s26 = sshll.u32 [#allocation5], 4
      %s27 = int_to_ptr.vmem [resolvable:$true] %s26
      %29 = dma.hbm_to_vmem [thread:$0]  %s1, 32, %s27, [#allocation6]
    $region9: #{tpu_custom_call.1} parent=1 // pred_fallthru
      _
    // Predicated region
    $region10: #{tpu_custom_call.1} parent=1 // pred_check
      _
    $region11: #{tpu_custom_call.1} parent=1 // pred_check_branch
      %31 = sbr.rel (0) target = $region13
    $region12: #{tpu_custom_call.1} parent=1 // pred_region
      %32 = dma.done [#allocation3], 64
    $region13: #{tpu_custom_call.1} parent=1 // pred_fallthru
      _
    // Predicated region
    $region14: #{tpu_custom_call.1} parent=1 // pred_check
      _
    $region15: #{tpu_custom_call.1} parent=1 // pred_check_branch
      %34 = sbr.rel (0) target = $region17
    $region16: #{tpu_custom_call.1} parent=1 // pred_region
      %35 = dma.done [#allocation6], 32
    $region17: #{tpu_custom_call.1} parent=1 // pred_fallthru
      _
    %v36 = vld [vmem:[#allocation2] sm:$0xf]
    %v37 = vld [vmem:[#allocation5] sm:$0x3]
    %v39 = vlaneseq
    %v40 = vshrl.u32 %v39, 7
    %v41 = vsub.s32 0, %v40
    %v42 = vrot.slane %v37, %v41
    %v43 = vlaneseq
    %v44 = vshrl.u32 %v43, 7
    %v45 = vsub.s32 1, %v44
    %v46 = vrot.slane %v37, %v45
    %v47 = vcombine.low %v42, %v46
    %v49 = vunpack.c.l.s4 1983009808
    %v50 = vunpack.c.0.s8 %v49
    %v51 = vlaneseq
    %v52 = vshrl.u32 %v51, 7
    %v53 = vsub.s32 %v50, %v52
    %v54 = vrot.slane %v47, %v53
    %v56 = vadd.f32 %v36, %v54
    %57 = vst [vmem:[#allocation7] sm:$0xf] %v56
    // Predicated region
    $region18: #{tpu_custom_call.1} parent=1 // pred_check
      _
    $region19: #{tpu_custom_call.1} parent=1 // pred_check_branch
      %59 = sbr.rel (0) target = $region21
    $region20: #{tpu_custom_call.1} parent=1 // pred_region
      %s61 = ssub.s32 64, 64
      %62 = vsyncadd [#allocation4], %s61
      %s64 = sshll.u32 [#allocation7], 4
      %s65 = int_to_ptr.vmem [resolvable:$true] %s64
      %67 = dma.vmem_to_hbm [thread:$0]  %s65, 64, %s2, [#allocation4]
    $region21: #{tpu_custom_call.1} parent=1 // pred_fallthru
      _
    // Predicated region
    $region22: #{tpu_custom_call.1} parent=1 // pred_check
      _
    $region23: #{tpu_custom_call.1} parent=1 // pred_check_branch
      %69 = sbr.rel (0) target = $region25
    $region24: #{tpu_custom_call.1} parent=1 // pred_region
      %70 = dma.done [#allocation4], 64
    $region25: #{tpu_custom_call.1} parent=1 // pred_fallthru
      _
    %71 = vsyncpa [#allocation3], 1
    %72 = vsyncpa [#allocation6], 1
    %73 = vsyncpa [#allocation4], 1

</llo_original>
